<compile_context>
chip_gen: v7x
topology: tpu7x:2x2x1
jax: 0.10.0
libtpu: 0.0.40
codegen_flags: <defaults>
</compile_context>

<pallas_src>
import functools
import math
import numpy as np
import jax
import jax.numpy as jnp
from jax.experimental import pallas as pl
from jax.experimental.pallas import tpu as pltpu


# ----------------------------- helpers -----------------------------

def _round_up(x, m):
    return ((x + m - 1) // m) * m


@functools.lru_cache(maxsize=None)
def _vmem_capacity_bytes():
    """Per-core VMEM capacity; conservative 64 MiB (v7x) fallback."""
    try:
        info = pltpu.get_tpu_info()
        cap = int(getattr(info, "vmem_capacity_bytes", 0) or 0)
        if cap > 0:
            return cap
    except Exception:
        pass
    return 64 << 20


def _budgets():
    """(w_budget, x_budget, out_budget) in bytes for double-buffered tiles."""
    cap = _vmem_capacity_bytes()
    pipe = int(min(cap, 128 << 20) * 0.55)
    w_budget = pipe // 2
    x_budget = pipe // 5
    out_budget = pipe - w_budget - x_budget
    return w_budget, x_budget, out_budget


def _choose_tn_tk(d, w_itemsize, w_budget):
    """Pick (tn, tk, d_pad): lane-dense output tile width tn, reduction tile
    tk (divides d_pad), keeping the double-buffered (tk, tn) weight block
    within w_budget bytes."""
    d_pad0 = _round_up(d, 128)
    for tn in (1024, 512, 256, 128):
        tk_max = (w_budget // (2 * tn * w_itemsize)) // 128 * 128
        if tk_max < 128:
            continue
        if d_pad0 <= tk_max:
            return tn, d_pad0, d_pad0          # no K tiling needed
        # K tiling: split D into nk equal 128-aligned chunks.
        nk = -(-d_pad0 // tk_max)              # ceil
        tk = _round_up(-(-d_pad0 // nk), 128)
        return tn, tk, nk * tk
    return 128, 128, d_pad0                    # pathological fallback


def _choose_tb(b, tk, tn, x_itemsize, x_budget, out_budget):
    """Pick (tb, b_pad).  Single batch tile (=> weights streamed from HBM
    exactly once) whenever the batch fits the VMEM budget."""
    max_tb = min(x_budget // (2 * tk * x_itemsize),
                 out_budget // (3 * tn * 4),
                 1024)
    b_small = _round_up(b, 16)
    if b_small <= max_tb:
        return int(b_small), int(b_small)
    for tb in (512, 256, 128):
        if tb <= max_tb:
            return tb, _round_up(b, tb)
    tb = max(128, (int(max_tb) // 128) * 128)
    return tb, _round_up(b, tb)


# ----------------------------- Pallas kernel -----------------------------

def _fused_linear_kernel(x_ref, w_ref, b_ref, o_ref, acc_ref):
    # x_ref: (tb, tk) bf16   w_ref: (tk, tn) bf16
    # b_ref: (1, tn) f32     o_ref: (tb, tn) f32   acc_ref: (tb, tn) f32
    k = pl.program_id(2)

    @pl.when(k == 0)
    def _():
        acc_ref[...] = jnp.zeros_like(acc_ref)

    acc_ref[...] += jnp.dot(x_ref[...], w_ref[...],
                            preferred_element_type=jnp.float32)

    @pl.when(k == pl.num_programs(2) - 1)
    def _():
        o_ref[...] = (acc_ref[...] + b_ref[...]).astype(o_ref.dtype)


def fused_linear(x_pad, w_pad, b_pad, *, tb, tn, tk):
    """y = x_pad @ w_pad + b_pad, tiled over (batch, output, reduction).

    x_pad: (B_pad, D_pad)   B_pad % tb == 0, D_pad % tk == 0
    w_pad: (D_pad, O_pad)   O_pad % tn == 0   (pre-transposed weight slab)
    b_pad: (1, O_pad)       f32 (zeros where no bias / padding)
    """
    B_pad, D_pad = x_pad.shape
    D2, O_pad = w_pad.shape
    assert D_pad == D2 and B_pad % tb == 0 and O_pad % tn == 0 and D_pad % tk == 0

    nb, nj, nk = B_pad // tb, O_pad // tn, D_pad // tk
    grid = (nb, nj, nk)

    x_spec = pl.BlockSpec((tb, tk), lambda i, j, k: (i, k))
    w_spec = pl.BlockSpec((tk, tn), lambda i, j, k: (k, j))
    b_spec = pl.BlockSpec((1, tn), lambda i, j, k: (0, j))
    o_spec = pl.BlockSpec((tb, tn), lambda i, j, k: (i, j))

    x_item = x_pad.dtype.itemsize
    w_item = w_pad.dtype.itemsize

    vmem_needed = (2 * tb * tk * x_item        # x (double-buffered)
                   + 2 * tk * tn * w_item      # weights (double-buffered)
                   + 2 * tn * 4                # bias
                   + 2 * tb * tn * 4           # output
                   + tb * tn * 4)              # accumulator scratch
    vmem_cap = _vmem_capacity_bytes()
    vmem_limit = min(int(vmem_cap * 0.9), max(32 << 20, 2 * vmem_needed))
    vmem_limit = max(vmem_limit, vmem_needed + (4 << 20))
    vmem_limit = min(vmem_limit, int(vmem_cap * 0.95))

    # Weights are streamed once per batch tile; x is re-streamed per output
    # tile only when K is tiled (nk > 1) — with nk == 1 the x block index is
    # unchanged across consecutive output tiles, so Pallas skips the re-copy.
    x_passes = nj if nk > 1 else 1
    cost = pl.CostEstimate(
        flops=2 * B_pad * O_pad * D_pad,
        transcendentals=0,
        bytes_accessed=(nb * D_pad * O_pad * w_item
                        + x_passes * B_pad * D_pad * x_item
                        + nb * O_pad * 4
                        + B_pad * O_pad * 4),
    )

    return pl.pallas_call(
        _fused_linear_kernel,
        out_shape=jax.ShapeDtypeStruct((B_pad, O_pad), jnp.float32),
        grid_spec=pltpu.PrefetchScalarGridSpec(
            num_scalar_prefetch=0,
            grid=grid,
            in_specs=[x_spec, w_spec, b_spec],
            out_specs=o_spec,
            scratch_shapes=[pltpu.VMEM((tb, tn), jnp.float32)],
        ),
        compiler_params=pltpu.CompilerParams(
            dimension_semantics=("parallel", "parallel", "arbitrary"),
            vmem_limit_bytes=int(vmem_limit),
        ),
        cost_estimate=cost,
    )(x_pad, w_pad, b_pad)


# --------------------------- ParallelLinear (JAX) ---------------------------

class ParallelLinearPallas:
    """JAX/Pallas re-implementation of ParallelLinear's forward pass.

    Parameters initialized like the PyTorch module:
      weight ~ kaiming_uniform_(a=sqrt(5))  -> U(-1/sqrt(fan_in), 1/sqrt(fan_in))
      bias   ~ U(-1/sqrt(fan_in), 1/sqrt(fan_in))

    All partitions are fused into a single padded, pre-transposed (D_pad,
    O_pad) weight slab (built once in __init__, stored in bf16), so forward()
    is one pallas_call; per-partition outputs are slices of the fused result.
    """

    def __init__(self, input_size, output_size, bias=(True, True),
                 num_partitions=2, key=None, param_dtype=jnp.bfloat16):
        self.input_size = input_size
        self.output_size = output_size
        self.num_partitions = num_partitions
        self.param_dtype = param_dtype
        self.compute_dtype = param_dtype

        # np.array_split semantics for per-partition output sizes
        self._output_sizes = [item.size for item in
                              np.array_split(np.arange(output_size), num_partitions)]
        if isinstance(bias, bool):
            bias = (bias,) * num_partitions
        self.bias_flags = list(bias)
        assert len(self.bias_flags) == num_partitions

        if key is None:
            key = jax.random.PRNGKey(0)

        fan_in = input_size
        bound = 1.0 / math.sqrt(fan_in)   # kaiming_uniform(a=sqrt(5)) bound

        self.weights = []    # list of (O_p, D) f32 — PyTorch layout, reference
        self.biases = []     # list of (O_p,) f32 or None
        for o, use_bias in zip(self._output_sizes, self.bias_flags):
            key, wk, bk = jax.random.split(key, 3)
            w = jax.random.uniform(wk, (o, input_size), jnp.float32,
                                   minval=-bound, maxval=bound)
            self.weights.append(w)
            if use_bias:
                b = jax.random.uniform(bk, (o,), jnp.float32,
                                       minval=-bound, maxval=bound)
            else:
                b = None
            self.biases.append(b)

        # ---- one-time fused, padded, pre-transposed parameter slabs ----
        self._w_budget, self._x_budget, self._out_budget = _budgets()
        w_item = jnp.dtype(param_dtype).itemsize
        self._tn, self._tk, self._d_pad = _choose_tn_tk(
            input_size, w_item, self._w_budget)

        # Each partition padded to a 128-lane boundary (cheap, lane-aligned
        # slicing); the total slab width padded once to a multiple of tn.
        self._o_pads = [_round_up(o, 128) for o in self._output_sizes]
        self._offsets = np.cumsum([0] + self._o_pads[:-1]).tolist()
        self._o_pad_total = _round_up(int(sum(self._o_pads)), self._tn)

        wT = jnp.zeros((self._d_pad, self._o_pad_total), param_dtype)
        b_f = jnp.zeros((1, self._o_pad_total), jnp.float32)
        for w, b, o, off in zip(self.weights, self.biases,
                                self._output_sizes, self._offsets):
            wT = wT.at[:input_size, off:off + o].set(w.T.astype(param_dtype))
            if b is not None:
                b_f = b_f.at[0, off:off + o].set(b)
        self._wT_fused = wT          # (D_pad, O_pad) param_dtype
        self._b_fused = b_f          # (1, O_pad)     f32

    # -- fused padded slab (no per-partition column-slice copies) --
    def forward_fused(self, embed):
        B, D = embed.shape
        assert D == self.input_size
        x_item = jnp.dtype(self.compute_dtype).itemsize
        tb, B_pad = _choose_tb(B, self._tk, self._tn, x_item,
                               self._x_budget, self._out_budget)
        x_pad = jnp.zeros((B_pad, self._d_pad), self.compute_dtype)
        x_pad = x_pad.at[:B, :D].set(embed.astype(self.compute_dtype))
        y = fused_linear(x_pad, self._wT_fused, self._b_fused,
                         tb=tb, tn=self._tn, tk=self._tk)   # (B_pad, O_pad)
        return y, self._offsets, self._output_sizes

    def forward(self, embed):
        """Returns a list of per-partition logits (matches PyTorch forward)."""
        y, offsets, sizes = self.forward_fused(embed)
        B = embed.shape[0]
        # Per-partition column slices kept in the wrapper for API parity;
        # bandwidth-sensitive consumers should use forward_fused() directly.
        return [y[:B, off:off + o] for o, off in zip(sizes, offsets)]

    def __call__(self, embed):
        return self.forward(embed)


# ----------------------------------- main -----------------------------------

if __name__ == "__main__":
    key = jax.random.PRNGKey(0)
    k_x, k_params = jax.random.split(key)

    batch = 8
    input_size = 32
    output_size = 64
    num_partitions = 2

    x = jax.random.normal(k_x, (batch, input_size), jnp.float32)

    model = ParallelLinearPallas(input_size, output_size,
                                 bias=(True, True),
                                 num_partitions=num_partitions,
                                 key=k_params)

    outs = model(x)
    outs = [jax.block_until_ready(o) for o in outs]

    # Reference check: same bf16 quantization of x / W as the kernel,
    # f32 accumulation (apples-to-apples), plus a loose check vs pure f32.
    ok = True
    x_q = x.astype(jnp.bfloat16).astype(jnp.float32)
    for p in range(num_partitions):
        w_q = model.weights[p].astype(jnp.bfloat16).astype(jnp.float32)
        ref_q = jnp.dot(x_q, w_q.T, preferred_element_type=jnp.float32)
        ref_f = jnp.dot(x, model.weights[p].T, preferred_element_type=jnp.float32)
        if model.biases[p] is not None:
            ref_q = ref_q + model.biases[p][None, :]
            ref_f = ref_f + model.biases[p][None, :]
        ok &= bool(jnp.allclose(outs[p], ref_q, atol=1e-4, rtol=1e-4))
        ok &= bool(jnp.allclose(outs[p], ref_f, atol=5e-2, rtol=5e-2))
        ok &= outs[p].shape == (batch, model._output_sizes[p])

    print("KERNEL_OK" if ok else "KERNEL_MISMATCH")
</pallas_src>

<mosaic_0001>
module attributes {stable_mosaic.version = 11 : i64} {
  func.func @_fused_linear_kernel(%arg0: i32, %arg1: i32, %arg2: i32, %arg3: memref<16x128xbf16, #tpu.memory_space<vmem>>, %arg4: memref<128x1024xbf16, #tpu.memory_space<vmem>>, %arg5: memref<1x1024xf32, #tpu.memory_space<vmem>>, %arg6: memref<16x1024xf32, #tpu.memory_space<vmem>>, %arg7: memref<16x1024xf32, #tpu.memory_space<vmem>>) attributes {dimension_semantics = [#tpu.dimension_semantics<parallel>, #tpu.dimension_semantics<parallel>, #tpu.dimension_semantics<arbitrary>], iteration_bounds = array<i64: 1, 1, 1>, scalar_prefetch = 0 : i64, scratch_operands = 1 : i64, tpu.core_type = #tpu.core_type<tc>, window_params = [{transform_indices = @transform_0, window_bounds = array<i64: 16, 128>}, {transform_indices = @transform_1, window_bounds = array<i64: 128, 1024>}, {transform_indices = @transform_2, window_bounds = array<i64: 1, 1024>}, {transform_indices = @transform_3, window_bounds = array<i64: 16, 1024>}]} {
    %c0_i32 = arith.constant 0 : i32
    %0 = arith.cmpi eq, %arg2, %c0_i32 : i32
    %1 = arith.extui %0 : i1 to i32
    %c0_i32_0 = arith.constant 0 : i32
    %2 = arith.cmpi ne, %1, %c0_i32_0 : i32
    scf.if %2 {
      %cst_10 = arith.constant 0.000000e+00 : f32
      %12 = vector.broadcast %cst_10 : f32 to vector<16x1024xf32>
      %c0_11 = arith.constant 0 : index
      %c0_12 = arith.constant 0 : index
      %13 = vector.load %arg7[%c0_11, %c0_12] : memref<16x1024xf32, #tpu.memory_space<vmem>>, vector<16x1024xf32>
      tpu.vector_store %arg7[%c0_11, %c0_12], %12 {strides = array<i32>} : memref<16x1024xf32, #tpu.memory_space<vmem>>, vector<16x1024xf32>,
    } else {
    }
    %c0 = arith.constant 0 : index
    %c0_1 = arith.constant 0 : index
    %3 = vector.load %arg7[%c0, %c0_1] : memref<16x1024xf32, #tpu.memory_space<vmem>>, vector<16x1024xf32>
    %c0_2 = arith.constant 0 : index
    %c0_3 = arith.constant 0 : index
    %4 = vector.load %arg3[%c0_2, %c0_3] : memref<16x128xbf16, #tpu.memory_space<vmem>>, vector<16x128xbf16>
    %c0_4 = arith.constant 0 : index
    %c0_5 = arith.constant 0 : index
    %5 = vector.load %arg4[%c0_4, %c0_5] : memref<128x1024xbf16, #tpu.memory_space<vmem>>, vector<128x1024xbf16>
    %cst = arith.constant dense<0.000000e+00> : vector<16x1024xf32>
    %6 = tpu.matmul %4, %5, %cst {dimension_numbers = #tpu.dot_dimension_numbers<[1], [0], [0], [1], [0, 0, 1, 1], [], []>} : vector<16x128xbf16>, vector<128x1024xbf16>, vector<16x1024xf32> -> vector<16x1024xf32>
    %7 = arith.addf %3, %6 : vector<16x1024xf32>
    %c0_6 = arith.constant 0 : index
    %c0_7 = arith.constant 0 : index
    %8 = vector.load %arg7[%c0_6, %c0_7] : memref<16x1024xf32, #tpu.memory_space<vmem>>, vector<16x1024xf32>
    tpu.vector_store %arg7[%c0_6, %c0_7], %7 {strides = array<i32>} : memref<16x1024xf32, #tpu.memory_space<vmem>>, vector<16x1024xf32>,
    %c0_i32_8 = arith.constant 0 : i32
    %9 = arith.cmpi eq, %arg2, %c0_i32_8 : i32
    %10 = arith.extui %9 : i1 to i32
    %c0_i32_9 = arith.constant 0 : i32
    %11 = arith.cmpi ne, %10, %c0_i32_9 : i32
    scf.if %11 {
      %c0_10 = arith.constant 0 : index
      %c0_11 = arith.constant 0 : index
      %12 = vector.load %arg7[%c0_10, %c0_11] : memref<16x1024xf32, #tpu.memory_space<vmem>>, vector<16x1024xf32>
      %c0_12 = arith.constant 0 : index
      %c0_13 = arith.constant 0 : index
      %13 = vector.load %arg5[%c0_12, %c0_13] : memref<1x1024xf32, #tpu.memory_space<vmem>>, vector<1x1024xf32>
      %14 = vector.broadcast %13 : vector<1x1024xf32> to vector<16x1024xf32>
      %15 = arith.addf %12, %14 : vector<16x1024xf32>
      %c0_14 = arith.constant 0 : index
      %c0_15 = arith.constant 0 : index
      %16 = vector.load %arg6[%c0_14, %c0_15] : memref<16x1024xf32, #tpu.memory_space<vmem>>, vector<16x1024xf32>
      tpu.vector_store %arg6[%c0_14, %c0_15], %15 {strides = array<i32>} : memref<16x1024xf32, #tpu.memory_space<vmem>>, vector<16x1024xf32>,
    } else {
    }
    return
  }
  func.func @transform_0(%arg0: i32, %arg1: i32, %arg2: i32) -> (i32, i32) {
    %c0_i32 = arith.constant 0 : i32
    return %arg0, %arg2 : i32, i32
  }
  func.func @transform_1(%arg0: i32, %arg1: i32, %arg2: i32) -> (i32, i32) {
    %c0_i32 = arith.constant 0 : i32
    return %arg2, %arg1 : i32, i32
  }
  func.func @transform_2(%arg0: i32, %arg1: i32, %arg2: i32) -> (i32, i32) {
    %c0_i32 = arith.constant 0 : i32
    %c0_i32_0 = arith.constant 0 : i32
    return %c0_i32, %arg1 : i32, i32
  }
  func.func @transform_3(%arg0: i32, %arg1: i32, %arg2: i32) -> (i32, i32) {
    %c0_i32 = arith.constant 0 : i32
    return %arg0, %arg1 : i32, i32
  }
}

</mosaic_0001>

<llo_original>
// kernel: tpu_custom_call.1
$region0: #{tpu_custom_call.1}
  #allocation0 [shape = 'u32[]', space=smem, size = 0x4, offset = 0x4, fixed_abs, tag = 'smem constant byte address 0x4 - core index']
  #allocation1 [shape = 'u32[144,128]{1,0:T(1,128)}', space=vmem, size = 0x12000, scoped, tag = 'internal scratch']
  #allocation2 [shape = 'f32[16,1024]{1,0:T(8,128)}', space=vmem, size = 0x10000, scoped, tag = 'scratch operand']
  %s0 = inlined_call_operand.hbm [shape: bf16[16,128], index: 0, kind: input, shape index: {}]
  %s1 = inlined_call_operand.hbm [shape: bf16[128,1024], index: 1, kind: input, shape index: {}]
  %s2 = inlined_call_operand.hbm [shape: f32[1,1024], index: 2, kind: input, shape index: {}]
  %s3 = inlined_call_operand.hbm [shape: f32[16,1024], index: 3, kind: output, shape index: {}]
  %s4 = sld [smem:[#allocation0]]
  $region42: #{tpu_custom_call.1} parent=0
    _
  %s6 = ssub.s32 1, %s4
  %s7 = scalar_select 0, %s6, %s4
  $region1: #{tpu_custom_call.1} parent=0
    #allocation3 [shape = 'u8[4096]{0}', space=vmem, size = 0x1000, scoped, tag = 'input window, operand 0, single buffered']
    #allocation4 [shape = 's32[1]{0}', space=sflag, size = 0x4, scoped, tag = 'scoped memory for tpu_custom_call.1']
    #allocation5 [shape = 's32[1]{0}', space=sflag, size = 0x4, scoped, tag = 'scoped memory for tpu_custom_call.1']
    #allocation6 [shape = 'u8[262144]{0}', space=vmem, size = 0x40000, scoped, tag = 'input window, operand 1, single buffered']
    #allocation7 [shape = 's32[1]{0}', space=sflag, size = 0x4, scoped, tag = 'scoped memory for tpu_custom_call.1']
    #allocation8 [shape = 'u8[4096]{0}', space=vmem, size = 0x1000, scoped, tag = 'input window, operand 2, single buffered']
    #allocation9 [shape = 'u8[65536]{0}', space=vmem, size = 0x10000, scoped, tag = 'output window, operand 0, single buffered']
    %8 = vsyncpa [#allocation4], 0
    %9 = vsyncpa [#allocation7], 0
    %10 = vsyncpa [#allocation5], 0
    // Predicated region
    $region2: #{tpu_custom_call.1} parent=1 // pred_check
      _
    $region3: #{tpu_custom_call.1} parent=1 // pred_check_branch
      %12 = sbr.rel (0) target = $region5
    $region4: #{tpu_custom_call.1} parent=1 // pred_region
      %s14 = ssub.s32 128, 128
      %15 = vsyncadd [#allocation4], %s14
      %s16 = sshll.u32 [#allocation3], 4
      %s17 = int_to_ptr.vmem [resolvable:$true] %s16
      %22 = dma.hbm_to_vmem [thread:$0]  %s0, 128, %s17, [#allocation4], 64, 64, 4
    $region5: #{tpu_custom_call.1} parent=1 // pred_fallthru
      _
    // Predicated region
    $region6: #{tpu_custom_call.1} parent=1 // pred_check
      _
    $region7: #{tpu_custom_call.1} parent=1 // pred_check_branch
      %24 = sbr.rel (0) target = $region9
    $region8: #{tpu_custom_call.1} parent=1 // pred_region
      %s26 = ssub.s32 8192, 8192
      %27 = vsyncadd [#allocation7], %s26
      %s28 = sshll.u32 [#allocation6], 4
      %s29 = int_to_ptr.vmem [resolvable:$true] %s28
      %34 = dma.hbm_to_vmem [thread:$0]  %s1, 8192, %s29, [#allocation7], 512, 512, 32
    $region9: #{tpu_custom_call.1} parent=1 // pred_fallthru
      _
    // Predicated region
    $region10: #{tpu_custom_call.1} parent=1 // pred_check
      _
    $region11: #{tpu_custom_call.1} parent=1 // pred_check_branch
      %36 = sbr.rel (0) target = $region13
    $region12: #{tpu_custom_call.1} parent=1 // pred_region
      %s38 = ssub.s32 128, 128
      %39 = vsyncadd [#allocation7], %s38
      %s41 = sshll.u32 [#allocation8], 4
      %s42 = int_to_ptr.vmem [resolvable:$true] %s41
      %44 = dma.hbm_to_vmem [thread:$0]  %s2, 128, %s42, [#allocation7]
    $region13: #{tpu_custom_call.1} parent=1 // pred_fallthru
      _
    // Predicated region
    $region14: #{tpu_custom_call.1} parent=1 // pred_check
      _
    $region15: #{tpu_custom_call.1} parent=1 // pred_check_branch
      %46 = sbr.rel (0) target = $region17
    $region16: #{tpu_custom_call.1} parent=1 // pred_region
      %47 = dma.done [#allocation4], 128
    $region17: #{tpu_custom_call.1} parent=1 // pred_fallthru
      _
    // Predicated region
    $region18: #{tpu_custom_call.1} parent=1 // pred_check
      _
    $region19: #{tpu_custom_call.1} parent=1 // pred_check_branch
      %49 = sbr.rel (0) target = $region21
    $region20: #{tpu_custom_call.1} parent=1 // pred_region
      %50 = dma.done [#allocation7], 8192
    $region21: #{tpu_custom_call.1} parent=1 // pred_fallthru
      _
    // Predicated region
    $region22: #{tpu_custom_call.1} parent=1 // pred_check
      _
    $region23: #{tpu_custom_call.1} parent=1 // pred_check_branch
      %52 = sbr.rel (0) target = $region25
    $region24: #{tpu_custom_call.1} parent=1 // pred_region
      %53 = dma.done [#allocation7], 128
    $region25: #{tpu_custom_call.1} parent=1 // pred_fallthru
      _
    %p55 = scmp.eq.s32.totalorder 0, 0
    // Predicated region
    $region26: #{tpu_custom_call.1} parent=1 // pred_check
      %p56 = pneg %p55
    $region27: #{tpu_custom_call.1} parent=1 // pred_check_branch
      %58 = sbr.rel (%p56) target = $region29
    $region28: #{tpu_custom_call.1} parent=1 // pred_region
      %59 = vst [vmem:[#allocation2] sm:$0xff] 0.0
      %60 = vst [vmem:[#allocation2 + $0x8] sm:$0xff] 0.0
      %61 = vst [vmem:[#allocation2 + $0x10] sm:$0xff] 0.0
      %62 = vst [vmem:[#allocation2 + $0x18] sm:$0xff] 0.0
      %63 = vst [vmem:[#allocation2 + $0x20] sm:$0xff] 0.0
      %64 = vst [vmem:[#allocation2 + $0x28] sm:$0xff] 0.0
      %65 = vst [vmem:[#allocation2 + $0x30] sm:$0xff] 0.0
      %66 = vst [vmem:[#allocation2 + $0x38] sm:$0xff] 0.0
      %67 = vst [vmem:[#allocation2 + $0x40] sm:$0xff] 0.0
      %68 = vst [vmem:[#allocation2 + $0x48] sm:$0xff] 0.0
      %69 = vst [vmem:[#allocation2 + $0x50] sm:$0xff] 0.0
      %70 = vst [vmem:[#allocation2 + $0x58] sm:$0xff] 0.0
      %71 = vst [vmem:[#allocation2 + $0x60] sm:$0xff] 0.0
      %72 = vst [vmem:[#allocation2 + $0x68] sm:$0xff] 0.0
      %73 = vst [vmem:[#allocation2 + $0x70] sm:$0xff] 0.0
      %74 = vst [vmem:[#allocation2 + $0x78] sm:$0xff] 0.0
    $region29: #{tpu_custom_call.1} parent=1 // pred_fallthru
      _
    %v75 = vld [vmem:[#allocation2] sm:$0xff]
    %v76 = vld [vmem:[#allocation2 + $0x8] sm:$0xff]
    %v77 = vld [vmem:[#allocation2 + $0x10] sm:$0xff]
    %v78 = vld [vmem:[#allocation2 + $0x18] sm:$0xff]
    %v79 = vld [vmem:[#allocation2 + $0x20] sm:$0xff]
    %v80 = vld [vmem:[#allocation2 + $0x28] sm:$0xff]
    %v81 = vld [vmem:[#allocation2 + $0x30] sm:$0xff]
    %v82 = vld [vmem:[#allocation2 + $0x38] sm:$0xff]
    %v83 = vld [vmem:[#allocation2 + $0x40] sm:$0xff]
    %v84 = vld [vmem:[#allocation2 + $0x48] sm:$0xff]
    %v85 = vld [vmem:[#allocation2 + $0x50] sm:$0xff]
    %v86 = vld [vmem:[#allocation2 + $0x58] sm:$0xff]
    %v87 = vld [vmem:[#allocation2 + $0x60] sm:$0xff]
    %v88 = vld [vmem:[#allocation2 + $0x68] sm:$0xff]
    %v89 = vld [vmem:[#allocation2 + $0x70] sm:$0xff]
    %v90 = vld [vmem:[#allocation2 + $0x78] sm:$0xff]
    %v91 = vld [vmem:[#allocation3] sm:$0xf]
    %v92 = vld [vmem:[#allocation3 + $0x4] sm:$0xf]
    %v93 = vld [vmem:[#allocation6] sm:$0xff]
    %v94 = vld [vmem:[#allocation6 + $0x8] sm:$0xff]
    %v95 = vld [vmem:[#allocation6 + $0x10] sm:$0xff]
    %v96 = vld [vmem:[#allocation6 + $0x18] sm:$0xff]
    %v97 = vld [vmem:[#allocation6 + $0x20] sm:$0xff]
    %v98 = vld [vmem:[#allocation6 + $0x28] sm:$0xff]
    %v99 = vld [vmem:[#allocation6 + $0x30] sm:$0xff]
    %v100 = vld [vmem:[#allocation6 + $0x38] sm:$0xff]
    %v101 = vld [vmem:[#allocation6 + $0x40] sm:$0xff]
    %v102 = vld [vmem:[#allocation6 + $0x48] sm:$0xff]
    %v103 = vld [vmem:[#allocation6 + $0x50] sm:$0xff]
    %v104 = vld [vmem:[#allocation6 + $0x58] sm:$0xff]
    %v105 = vld [vmem:[#allocation6 + $0x60] sm:$0xff]
    %v106 = vld [vmem:[#allocation6 + $0x68] sm:$0xff]
    %v107 = vld [vmem:[#allocation6 + $0x70] sm:$0xff]
    %v108 = vld [vmem:[#allocation6 + $0x78] sm:$0xff]
    %v109 = vld [vmem:[#allocation6 + $0x80] sm:$0xff]
    %v110 = vld [vmem:[#allocation6 + $0x88] sm:$0xff]
    %v111 = vld [vmem:[#allocation6 + $0x90] sm:$0xff]
    %v112 = vld [vmem:[#allocation6 + $0x98] sm:$0xff]
    %v113 = vld [vmem:[#allocation6 + $0xa0] sm:$0xff]
    %v114 = vld [vmem:[#allocation6 + $0xa8] sm:$0xff]
    %v115 = vld [vmem:[#allocation6 + $0xb0] sm:$0xff]
    %v116 = vld [vmem:[#allocation6 + $0xb8] sm:$0xff]
    %v117 = vld [vmem:[#allocation6 + $0xc0] sm:$0xff]
    %v118 = vld [vmem:[#allocation6 + $0xc8] sm:$0xff]
    %v119 = vld [vmem:[#allocation6 + $0xd0] sm:$0xff]
    %v120 = vld [vmem:[#allocation6 + $0xd8] sm:$0xff]
    %v121 = vld [vmem:[#allocation6 + $0xe0] sm:$0xff]
    %v122 = vld [vmem:[#allocation6 + $0xe8] sm:$0xff]
    %v123 = vld [vmem:[#allocation6 + $0xf0] sm:$0xff]
    %v124 = vld [vmem:[#allocation6 + $0xf8] sm:$0xff]
    %v125 = vld [vmem:[#allocation6 + $0x100] sm:$0xff]
    %v126 = vld [vmem:[#allocation6 + $0x108] sm:$0xff]
    %v127 = vld [vmem:[#allocation6 + $0x110] sm:$0xff]
    %v128 = vld [vmem:[#allocation6 + $0x118] sm:$0xff]
    %v129 = vld [vmem:[#allocation6 + $0x120] sm:$0xff]
    %v130 = vld [vmem:[#allocation6 + $0x128] sm:$0xff]
    %v131 = vld [vmem:[#allocation6 + $0x130] sm:$0xff]
    %v132 = vld [vmem:[#allocation6 + $0x138] sm:$0xff]
    %v133 = vld [vmem:[#allocation6 + $0x140] sm:$0xff]
    %v134 = vld [vmem:[#allocation6 + $0x148] sm:$0xff]
    %v135 = vld [vmem:[#allocation6 + $0x150] sm:$0xff]
    %v136 = vld [vmem:[#allocation6 + $0x158] sm:$0xff]
    %v137 = vld [vmem:[#allocation6 + $0x160] sm:$0xff]
    %v138 = vld [vmem:[#allocation6 + $0x168] sm:$0xff]
    %v139 = vld [vmem:[#allocation6 + $0x170] sm:$0xff]
    %v140 = vld [vmem:[#allocation6 + $0x178] sm:$0xff]
    %v141 = vld [vmem:[#allocation6 + $0x180] sm:$0xff]
    %v142 = vld [vmem:[#allocation6 + $0x188] sm:$0xff]
    %v143 = vld [vmem:[#allocation6 + $0x190] sm:$0xff]
    %v144 = vld [vmem:[#allocation6 + $0x198] sm:$0xff]
    %v145 = vld [vmem:[#allocation6 + $0x1a0] sm:$0xff]
    %v146 = vld [vmem:[#allocation6 + $0x1a8] sm:$0xff]
    %v147 = vld [vmem:[#allocation6 + $0x1b0] sm:$0xff]
    %v148 = vld [vmem:[#allocation6 + $0x1b8] sm:$0xff]
    %v149 = vld [vmem:[#allocation6 + $0x1c0] sm:$0xff]
    %v150 = vld [vmem:[#allocation6 + $0x1c8] sm:$0xff]
    %v151 = vld [vmem:[#allocation6 + $0x1d0] sm:$0xff]
    %v152 = vld [vmem:[#allocation6 + $0x1d8] sm:$0xff]
    %v153 = vld [vmem:[#allocation6 + $0x1e0] sm:$0xff]
    %v154 = vld [vmem:[#allocation6 + $0x1e8] sm:$0xff]
    %v155 = vld [vmem:[#allocation6 + $0x1f0] sm:$0xff]
    %v156 = vld [vmem:[#allocation6 + $0x1f8] sm:$0xff]
    %v159 = vunpack.c.l.b16 %v91
    %v160 = vunpack.c.l.b16 %v92
    %v161 = vpack.c.b16 %v160, %v159
    %v227 = vunpack.c.l.b16 %v93
    %v228 = vunpack.c.h.b16 %v93
    %v229 = vunpack.c.l.b16 %v94
    %v230 = vunpack.c.h.b16 %v94
    %v231 = vunpack.c.l.b16 %v95
    %v232 = vunpack.c.h.b16 %v95
    %v233 = vunpack.c.l.b16 %v96
    %v234 = vunpack.c.h.b16 %v96
    %v235 = vunpack.c.l.b16 %v97
    %v236 = vunpack.c.h.b16 %v97
    %v237 = vunpack.c.l.b16 %v98
    %v238 = vunpack.c.h.b16 %v98
    %v239 = vunpack.c.l.b16 %v99
    %v240 = vunpack.c.h.b16 %v99
    %v241 = vunpack.c.l.b16 %v100
    %v242 = vunpack.c.h.b16 %v100
    %v243 = vunpack.c.l.b16 %v101
    %v244 = vunpack.c.h.b16 %v101
    %v245 = vunpack.c.l.b16 %v102
    %v246 = vunpack.c.h.b16 %v102
    %v247 = vunpack.c.l.b16 %v103
    %v248 = vunpack.c.h.b16 %v103
    %v249 = vunpack.c.l.b16 %v104
    %v250 = vunpack.c.h.b16 %v104
    %v251 = vunpack.c.l.b16 %v105
    %v252 = vunpack.c.h.b16 %v105
    %v253 = vunpack.c.l.b16 %v106
    %v254 = vunpack.c.h.b16 %v106
    %v255 = vunpack.c.l.b16 %v107
    %v256 = vunpack.c.h.b16 %v107
    %v257 = vunpack.c.l.b16 %v108
    %v258 = vunpack.c.h.b16 %v108
    %v259 = vunpack.c.l.b16 %v109
    %v260 = vunpack.c.h.b16 %v109
    %v261 = vunpack.c.l.b16 %v110
    %v262 = vunpack.c.h.b16 %v110
    %v263 = vunpack.c.l.b16 %v111
    %v264 = vunpack.c.h.b16 %v111
    %v265 = vunpack.c.l.b16 %v112
    %v266 = vunpack.c.h.b16 %v112
    %v267 = vunpack.c.l.b16 %v113
    %v268 = vunpack.c.h.b16 %v113
    %v269 = vunpack.c.l.b16 %v114
    %v270 = vunpack.c.h.b16 %v114
    %v271 = vunpack.c.l.b16 %v115
    %v272 = vunpack.c.h.b16 %v115
    %v273 = vunpack.c.l.b16 %v116
    %v274 = vunpack.c.h.b16 %v116
    %v275 = vunpack.c.l.b16 %v117
    %v276 = vunpack.c.h.b16 %v117
    %v277 = vunpack.c.l.b16 %v118
    %v278 = vunpack.c.h.b16 %v118
    %v279 = vunpack.c.l.b16 %v119
    %v280 = vunpack.c.h.b16 %v119
    %v281 = vunpack.c.l.b16 %v120
    %v282 = vunpack.c.h.b16 %v120
    %v283 = vunpack.c.l.b16 %v121
    %v284 = vunpack.c.h.b16 %v121
    %v285 = vunpack.c.l.b16 %v122
    %v286 = vunpack.c.h.b16 %v122
    %v287 = vunpack.c.l.b16 %v123
    %v288 = vunpack.c.h.b16 %v123
    %v289 = vunpack.c.l.b16 %v124
    %v290 = vunpack.c.h.b16 %v124
    %v291 = vunpack.c.l.b16 %v125
    %v292 = vunpack.c.h.b16 %v125
    %v293 = vunpack.c.l.b16 %v126
    %v294 = vunpack.c.h.b16 %v126
    %v295 = vunpack.c.l.b16 %v127
    %v296 = vunpack.c.h.b16 %v127
    %v297 = vunpack.c.l.b16 %v128
    %v298 = vunpack.c.h.b16 %v128
    %v299 = vunpack.c.l.b16 %v129
    %v300 = vunpack.c.h.b16 %v129
    %v301 = vunpack.c.l.b16 %v130
    %v302 = vunpack.c.h.b16 %v130
    %v303 = vunpack.c.l.b16 %v131
    %v304 = vunpack.c.h.b16 %v131
    %v305 = vunpack.c.l.b16 %v132
    %v306 = vunpack.c.h.b16 %v132
    %v307 = vunpack.c.l.b16 %v133
    %v308 = vunpack.c.h.b16 %v133
    %v309 = vunpack.c.l.b16 %v134
    %v310 = vunpack.c.h.b16 %v134
    %v311 = vunpack.c.l.b16 %v135
    %v312 = vunpack.c.h.b16 %v135
    %v313 = vunpack.c.l.b16 %v136
    %v314 = vunpack.c.h.b16 %v136
    %v315 = vunpack.c.l.b16 %v137
    %v316 = vunpack.c.h.b16 %v137
    %v317 = vunpack.c.l.b16 %v138
    %v318 = vunpack.c.h.b16 %v138
    %v319 = vunpack.c.l.b16 %v139
    %v320 = vunpack.c.h.b16 %v139
    %v321 = vunpack.c.l.b16 %v140
    %v322 = vunpack.c.h.b16 %v140
    %v323 = vunpack.c.l.b16 %v141
    %v324 = vunpack.c.h.b16 %v141
    %v325 = vunpack.c.l.b16 %v142
    %v326 = vunpack.c.h.b16 %v142
    %v327 = vunpack.c.l.b16 %v143
    %v328 = vunpack.c.h.b16 %v143
    %v329 = vunpack.c.l.b16 %v144
    %v330 = vunpack.c.h.b16 %v144
    %v331 = vunpack.c.l.b16 %v145
    %v332 = vunpack.c.h.b16 %v145
    %v333 = vunpack.c.l.b16 %v146
    %v334 = vunpack.c.h.b16 %v146
    %v335 = vunpack.c.l.b16 %v147
    %v336 = vunpack.c.h.b16 %v147
    %v337 = vunpack.c.l.b16 %v148
    %v338 = vunpack.c.h.b16 %v148
    %v339 = vunpack.c.l.b16 %v149
    %v340 = vunpack.c.h.b16 %v149
    %v341 = vunpack.c.l.b16 %v150
    %v342 = vunpack.c.h.b16 %v150
    %v343 = vunpack.c.l.b16 %v151
    %v344 = vunpack.c.h.b16 %v151
    %v345 = vunpack.c.l.b16 %v152
    %v346 = vunpack.c.h.b16 %v152
    %v347 = vunpack.c.l.b16 %v153
    %v348 = vunpack.c.h.b16 %v153
    %v349 = vunpack.c.l.b16 %v154
    %v350 = vunpack.c.h.b16 %v154
    %v351 = vunpack.c.l.b16 %v155
    %v352 = vunpack.c.h.b16 %v155
    %v353 = vunpack.c.l.b16 %v156
    %v354 = vunpack.c.h.b16 %v156
    %v355 = vpack.c.b16 %v235, %v227
    %v356 = vpack.c.b16 %v236, %v228
    %v357 = vpack.c.b16 %v237, %v229
    %v358 = vpack.c.b16 %v238, %v230
    %v359 = vpack.c.b16 %v239, %v231
    %v360 = vpack.c.b16 %v240, %v232
    %v361 = vpack.c.b16 %v241, %v233
    %v362 = vpack.c.b16 %v242, %v234
    %v363 = vpack.c.b16 %v251, %v243
    %v364 = vpack.c.b16 %v252, %v244
    %v365 = vpack.c.b16 %v253, %v245
    %v366 = vpack.c.b16 %v254, %v246
    %v367 = vpack.c.b16 %v255, %v247
    %v368 = vpack.c.b16 %v256, %v248
    %v369 = vpack.c.b16 %v257, %v249
    %v370 = vpack.c.b16 %v258, %v250
    %v371 = vpack.c.b16 %v267, %v259
    %v372 = vpack.c.b16 %v268, %v260
    %v373 = vpack.c.b16 %v269, %v261
    %v374 = vpack.c.b16 %v270, %v262
    %v375 = vpack.c.b16 %v271, %v263
    %v376 = vpack.c.b16 %v272, %v264
    %v377 = vpack.c.b16 %v273, %v265
    %v378 = vpack.c.b16 %v274, %v266
    %v379 = vpack.c.b16 %v283, %v275
    %v380 = vpack.c.b16 %v284, %v276
    %v381 = vpack.c.b16 %v285, %v277
    %v382 = vpack.c.b16 %v286, %v278
    %v383 = vpack.c.b16 %v287, %v279
    %v384 = vpack.c.b16 %v288, %v280
    %v385 = vpack.c.b16 %v289, %v281
    %v386 = vpack.c.b16 %v290, %v282
    %v387 = vpack.c.b16 %v299, %v291
    %v388 = vpack.c.b16 %v300, %v292
    %v389 = vpack.c.b16 %v301, %v293
    %v390 = vpack.c.b16 %v302, %v294
    %v391 = vpack.c.b16 %v303, %v295
    %v392 = vpack.c.b16 %v304, %v296
    %v393 = vpack.c.b16 %v305, %v297
    %v394 = vpack.c.b16 %v306, %v298
    %v395 = vpack.c.b16 %v315, %v307
    %v396 = vpack.c.b16 %v316, %v308
    %v397 = vpack.c.b16 %v317, %v309
    %v398 = vpack.c.b16 %v318, %v310
    %v399 = vpack.c.b16 %v319, %v311
    %v400 = vpack.c.b16 %v320, %v312
    %v401 = vpack.c.b16 %v321, %v313
    %v402 = vpack.c.b16 %v322, %v314
    %v403 = vpack.c.b16 %v331, %v323
    %v404 = vpack.c.b16 %v332, %v324
    %v405 = vpack.c.b16 %v333, %v325
    %v406 = vpack.c.b16 %v334, %v326
    %v407 = vpack.c.b16 %v335, %v327
    %v408 = vpack.c.b16 %v336, %v328
    %v409 = vpack.c.b16 %v337, %v329
    %v410 = vpack.c.b16 %v338, %v330
    %v411 = vpack.c.b16 %v347, %v339
    %v412 = vpack.c.b16 %v348, %v340
    %v413 = vpack.c.b16 %v349, %v341
    %v414 = vpack.c.b16 %v350, %v342
    %v415 = vpack.c.b16 %v351, %v343
    %v416 = vpack.c.b16 %v352, %v344
    %v417 = vpack.c.b16 %v353, %v345
    %v418 = vpack.c.b16 %v354, %v346
    %483 = vmatprep.subr.bf16.mxu0 %v356
    %484 = vmatpush1.bf16.msra.mxu0 %v355
    %485 = vmatprep.subr.bf16.mxu0 %v364
    %486 = vmatpush1.bf16.msra.mxu0 %v363
    %487 = vmatprep.subr.bf16.mxu0 %v372
    %488 = vmatpush1.bf16.msra.mxu0 %v371
    %489 = vmatprep.subr.bf16.mxu0 %v380
    %490 = vmatpush1.bf16.msra.mxu0 %v379
    %491 = vmatprep.subr.bf16.mxu0 %v388
    %492 = vmatpush1.bf16.msra.mxu0 %v387
    %493 = vmatprep.subr.bf16.mxu0 %v396
    %494 = vmatpush1.bf16.msra.mxu0 %v395
    %495 = vmatprep.subr.bf16.mxu0 %v404
    %496 = vmatpush1.bf16.msra.mxu0 %v403
    %497 = vmatprep.subr.bf16.mxu0 %v412
    %498 = vmatpush1.bf16.msra.mxu0 %v411
    %499 = vmatprep.subr.bf16.mxu0 0
    %500 = vmatpush1.bf16.msra.mxu0 0
    %501 = vmatprep.subr.bf16.mxu0 0
    %502 = vmatpush1.bf16.msra.mxu0 0
    %503 = vmatprep.subr.bf16.mxu0 0
    %504 = vmatpush1.bf16.msra.mxu0 0
    %505 = vmatprep.subr.bf16.mxu0 0
    %506 = vmatpush1.bf16.msra.mxu0 0
    %507 = vmatprep.subr.bf16.mxu0 0
    %508 = vmatpush1.bf16.msra.mxu0 0
    %509 = vmatprep.subr.bf16.mxu0 0
    %510 = vmatpush1.bf16.msra.mxu0 0
    %511 = vmatprep.subr.bf16.mxu0 0
    %512 = vmatpush1.bf16.msra.mxu0 0
    %513 = vmatprep.subr.bf16.mxu0 0
    %514 = vmatpush1.bf16.msra.mxu0 0
    %515 = vmatprep.mubr.bf16.mxu0 0
    %516 = vmatmul.mubr.bf16.gmra.mrb[0].mxu0 %v161
    %v517 = vpop.f32.mrb[0].mxu0
    %v518 = vadd.f32 0.0, %v517
    %v519 = vpop.f32.mrb[0].mxu0
    %v520 = vadd.f32 0.0, %v519
    %v521 = vpop.f32.mrb[0].mxu0
    %v522 = vadd.f32 0.0, %v521
    %v523 = vpop.f32.mrb[0].mxu0
    %v524 = vadd.f32 0.0, %v523
    %525 = vdwg.mxu0
    %526 = vmatprep.subr.bf16.mxu0 %v358
    %527 = vmatpush1.bf16.msra.mxu0 %v357
    %528 = vmatprep.subr.bf16.mxu0 %v366
    %529 = vmatpush1.bf16.msra.mxu0 %v365
    %530 = vmatprep.subr.bf16.mxu0 %v374
    %531 = vmatpush1.bf16.msra.mxu0 %v373
    %532 = vmatprep.subr.bf16.mxu0 %v382
    %533 = vmatpush1.bf16.msra.mxu0 %v381
    %534 = vmatprep.subr.bf16.mxu0 %v390
    %535 = vmatpush1.bf16.msra.mxu0 %v389
    %536 = vmatprep.subr.bf16.mxu0 %v398
    %537 = vmatpush1.bf16.msra.mxu0 %v397
    %538 = vmatprep.subr.bf16.mxu0 %v406
    %539 = vmatpush1.bf16.msra.mxu0 %v405
    %540 = vmatprep.subr.bf16.mxu0 %v414
    %541 = vmatpush1.bf16.msra.mxu0 %v413
    %542 = vmatprep.subr.bf16.mxu0 0
    %543 = vmatpush1.bf16.msra.mxu0 0
    %544 = vmatprep.subr.bf16.mxu0 0
    %545 = vmatpush1.bf16.msra.mxu0 0
    %546 = vmatprep.subr.bf16.mxu0 0
    %547 = vmatpush1.bf16.msra.mxu0 0
    %548 = vmatprep.subr.bf16.mxu0 0
    %549 = vmatpush1.bf16.msra.mxu0 0
    %550 = vmatprep.subr.bf16.mxu0 0
    %551 = vmatpush1.bf16.msra.mxu0 0
    %552 = vmatprep.subr.bf16.mxu0 0
    %553 = vmatpush1.bf16.msra.mxu0 0
    %554 = vmatprep.subr.bf16.mxu0 0
    %555 = vmatpush1.bf16.msra.mxu0 0
    %556 = vmatprep.subr.bf16.mxu0 0
    %557 = vmatpush1.bf16.msra.mxu0 0
    %558 = vmatprep.mubr.bf16.mxu0 0
    %559 = vmatmul.mubr.bf16.gmra.mrb[0].mxu0 %v161
    %v560 = vpop.f32.mrb[0].mxu0
    %v561 = vadd.f32 0.0, %v560
    %v562 = vpop.f32.mrb[0].mxu0
    %v563 = vadd.f32 0.0, %v562
    %v564 = vpop.f32.mrb[0].mxu0
    %v565 = vadd.f32 0.0, %v564
    %v566 = vpop.f32.mrb[0].mxu0
    %v567 = vadd.f32 0.0, %v566
    %568 = vdwg.mxu0
    %569 = vmatprep.subr.bf16.mxu0 %v360
    %570 = vmatpush1.bf16.msra.mxu0 %v359
    %571 = vmatprep.subr.bf16.mxu0 %v368
    %572 = vmatpush1.bf16.msra.mxu0 %v367
    %573 = vmatprep.subr.bf16.mxu0 %v376
    %574 = vmatpush1.bf16.msra.mxu0 %v375
    %575 = vmatprep.subr.bf16.mxu0 %v384
    %576 = vmatpush1.bf16.msra.mxu0 %v383
    %577 = vmatprep.subr.bf16.mxu0 %v392
    %578 = vmatpush1.bf16.msra.mxu0 %v391
    %579 = vmatprep.subr.bf16.mxu0 %v400
    %580 = vmatpush1.bf16.msra.mxu0 %v399
    %581 = vmatprep.subr.bf16.mxu0 %v408
    %582 = vmatpush1.bf16.msra.mxu0 %v407
    %583 = vmatprep.subr.bf16.mxu0 %v416
    %584 = vmatpush1.bf16.msra.mxu0 %v415
    %585 = vmatprep.subr.bf16.mxu0 0
    %586 = vmatpush1.bf16.msra.mxu0 0
    %587 = vmatprep.subr.bf16.mxu0 0
    %588 = vmatpush1.bf16.msra.mxu0 0
    %589 = vmatprep.subr.bf16.mxu0 0
    %590 = vmatpush1.bf16.msra.mxu0 0
    %591 = vmatprep.subr.bf16.mxu0 0
    %592 = vmatpush1.bf16.msra.mxu0 0
    %593 = vmatprep.subr.bf16.mxu0 0
    %594 = vmatpush1.bf16.msra.mxu0 0
    %595 = vmatprep.subr.bf16.mxu0 0
    %596 = vmatpush1.bf16.msra.mxu0 0
    %597 = vmatprep.subr.bf16.mxu0 0
    %598 = vmatpush1.bf16.msra.mxu0 0
    %599 = vmatprep.subr.bf16.mxu0 0
    %600 = vmatpush1.bf16.msra.mxu0 0
    %601 = vmatprep.mubr.bf16.mxu0 0
    %602 = vmatmul.mubr.bf16.gmra.mrb[0].mxu0 %v161
    %v603 = vpop.f32.mrb[0].mxu0
    %v604 = vadd.f32 0.0, %v603
    %v605 = vpop.f32.mrb[0].mxu0
    %v606 = vadd.f32 0.0, %v605
    %v607 = vpop.f32.mrb[0].mxu0
    %v608 = vadd.f32 0.0, %v607
    %v609 = vpop.f32.mrb[0].mxu0
    %v610 = vadd.f32 0.0, %v609
    %611 = vdwg.mxu0
    %612 = vmatprep.subr.bf16.mxu0 %v362
    %613 = vmatpush1.bf16.msra.mxu0 %v361
    %614 = vmatprep.subr.bf16.mxu0 %v370
    %615 = vmatpush1.bf16.msra.mxu0 %v369
    %616 = vmatprep.subr.bf16.mxu0 %v378
    %617 = vmatpush1.bf16.msra.mxu0 %v377
    %618 = vmatprep.subr.bf16.mxu0 %v386
    %619 = vmatpush1.bf16.msra.mxu0 %v385
    %620 = vmatprep.subr.bf16.mxu0 %v394
    %621 = vmatpush1.bf16.msra.mxu0 %v393
    %622 = vmatprep.subr.bf16.mxu0 %v402
    %623 = vmatpush1.bf16.msra.mxu0 %v401
    %624 = vmatprep.subr.bf16.mxu0 %v410
    %625 = vmatpush1.bf16.msra.mxu0 %v409
    %626 = vmatprep.subr.bf16.mxu0 %v418
    %627 = vmatpush1.bf16.msra.mxu0 %v417
    %628 = vmatprep.subr.bf16.mxu0 0
    %629 = vmatpush1.bf16.msra.mxu0 0
    %630 = vmatprep.subr.bf16.mxu0 0
    %631 = vmatpush1.bf16.msra.mxu0 0
    %632 = vmatprep.subr.bf16.mxu0 0
    %633 = vmatpush1.bf16.msra.mxu0 0
    %634 = vmatprep.subr.bf16.mxu0 0
    %635 = vmatpush1.bf16.msra.mxu0 0
    %636 = vmatprep.subr.bf16.mxu0 0
    %637 = vmatpush1.bf16.msra.mxu0 0
    %638 = vmatprep.subr.bf16.mxu0 0
    %639 = vmatpush1.bf16.msra.mxu0 0
    %640 = vmatprep.subr.bf16.mxu0 0
    %641 = vmatpush1.bf16.msra.mxu0 0
    %642 = vmatprep.subr.bf16.mxu0 0
    %643 = vmatpush1.bf16.msra.mxu0 0
    %644 = vmatprep.mubr.bf16.mxu0 0
    %645 = vmatmul.mubr.bf16.gmra.mrb[0].mxu0 %v161
    %v646 = vpop.f32.mrb[0].mxu0
    %v647 = vadd.f32 0.0, %v646
    %v648 = vpop.f32.mrb[0].mxu0
    %v649 = vadd.f32 0.0, %v648
    %v650 = vpop.f32.mrb[0].mxu0
    %v651 = vadd.f32 0.0, %v650
    %v652 = vpop.f32.mrb[0].mxu0
    %v653 = vadd.f32 0.0, %v652
    %654 = vdwg.mxu0
    %v655 = vadd.f32 %v75, %v518
    %v656 = vadd.f32 %v76, %v520
    %v657 = vadd.f32 %v77, %v561
    %v658 = vadd.f32 %v78, %v563
    %v659 = vadd.f32 %v79, %v604
    %v660 = vadd.f32 %v80, %v606
    %v661 = vadd.f32 %v81, %v647
    %v662 = vadd.f32 %v82, %v649
    %v663 = vadd.f32 %v83, %v522
    %v664 = vadd.f32 %v84, %v524
    %v665 = vadd.f32 %v85, %v565
    %v666 = vadd.f32 %v86, %v567
    %v667 = vadd.f32 %v87, %v608
    %v668 = vadd.f32 %v88, %v610
    %v669 = vadd.f32 %v89, %v651
    %v670 = vadd.f32 %v90, %v653
    %671 = vst [vmem:[#allocation2] sm:$0xff] %v655
    %672 = vst [vmem:[#allocation2 + $0x8] sm:$0xff] %v656
    %673 = vst [vmem:[#allocation2 + $0x10] sm:$0xff] %v657
    %674 = vst [vmem:[#allocation2 + $0x18] sm:$0xff] %v658
    %675 = vst [vmem:[#allocation2 + $0x20] sm:$0xff] %v659
    %676 = vst [vmem:[#allocation2 + $0x28] sm:$0xff] %v660
    %677 = vst [vmem:[#allocation2 + $0x30] sm:$0xff] %v661
    %678 = vst [vmem:[#allocation2 + $0x38] sm:$0xff] %v662
    %679 = vst [vmem:[#allocation2 + $0x40] sm:$0xff] %v663
    %680 = vst [vmem:[#allocation2 + $0x48] sm:$0xff] %v664
    %681 = vst [vmem:[#allocation2 + $0x50] sm:$0xff] %v665
    %682 = vst [vmem:[#allocation2 + $0x58] sm:$0xff] %v666
    %683 = vst [vmem:[#allocation2 + $0x60] sm:$0xff] %v667
    %684 = vst [vmem:[#allocation2 + $0x68] sm:$0xff] %v668
    %685 = vst [vmem:[#allocation2 + $0x70] sm:$0xff] %v669
    %686 = vst [vmem:[#allocation2 + $0x78] sm:$0xff] %v670
    // Predicated region
    $region30: #{tpu_custom_call.1} parent=1 // pred_check
      %p687 = pneg %p55
    $region31: #{tpu_custom_call.1} parent=1 // pred_check_branch
      %689 = sbr.rel (%p687) target = $region33
    $region32: #{tpu_custom_call.1} parent=1 // pred_region
      %v690 = vld [vmem:[#allocation2] sm:$0xff]
      %v691 = vld [vmem:[#allocation2 + $0x8] sm:$0xff]
      %v692 = vld [vmem:[#allocation2 + $0x10] sm:$0xff]
      %v693 = vld [vmem:[#allocation2 + $0x18] sm:$0xff]
      %v694 = vld [vmem:[#allocation2 + $0x20] sm:$0xff]
      %v695 = vld [vmem:[#allocation2 + $0x28] sm:$0xff]
      %v696 = vld [vmem:[#allocation2 + $0x30] sm:$0xff]
      %v697 = vld [vmem:[#allocation2 + $0x38] sm:$0xff]
      %v698 = vld [vmem:[#allocation2 + $0x40] sm:$0xff]
      %v699 = vld [vmem:[#allocation2 + $0x48] sm:$0xff]
      %v700 = vld [vmem:[#allocation2 + $0x50] sm:$0xff]
      %v701 = vld [vmem:[#allocation2 + $0x58] sm:$0xff]
      %v702 = vld [vmem:[#allocation2 + $0x60] sm:$0xff]
      %v703 = vld [vmem:[#allocation2 + $0x68] sm:$0xff]
      %v704 = vld [vmem:[#allocation2 + $0x70] sm:$0xff]
      %v705 = vld [vmem:[#allocation2 + $0x78] sm:$0xff]
      %v706 = vld [vmem:[#allocation8] sm:$0xff]
      %v708 = vlaneseq
      %v709 = vshrl.u32 %v708, 7
      %v710 = vsub.s32 0, %v709
      %v711 = vrot.slane %v706, %v710
      %v712 = vlaneseq
      %v713 = vshrl.u32 %v712, 7
      %v714 = vsub.s32 1, %v713
      %v715 = vrot.slane %v706, %v714
      %v716 = vlaneseq
      %v717 = vshrl.u32 %v716, 7
      %v718 = vsub.s32 2, %v717
      %v719 = vrot.slane %v706, %v718
      %v720 = vlaneseq
      %v721 = vshrl.u32 %v720, 7
      %v722 = vsub.s32 3, %v721
      %v723 = vrot.slane %v706, %v722
      %v724 = vlaneseq
      %v725 = vshrl.u32 %v724, 7
      %v726 = vsub.s32 4, %v725
      %v727 = vrot.slane %v706, %v726
      %v728 = vlaneseq
      %v729 = vshrl.u32 %v728, 7
      %v730 = vsub.s32 5, %v729
      %v731 = vrot.slane %v706, %v730
      %v732 = vlaneseq
      %v733 = vshrl.u32 %v732, 7
      %v734 = vsub.s32 6, %v733
      %v735 = vrot.slane %v706, %v734
      %v736 = vlaneseq
      %v737 = vshrl.u32 %v736, 7
      %v738 = vsub.s32 7, %v737
      %v739 = vrot.slane %v706, %v738
      %v748 = vadd.f32 %v690, %v711
      %v749 = vadd.f32 %v691, %v715
      %v750 = vadd.f32 %v692, %v719
      %v751 = vadd.f32 %v693, %v723
      %v752 = vadd.f32 %v694, %v727
      %v753 = vadd.f32 %v695, %v731
      %v754 = vadd.f32 %v696, %v735
      %v755 = vadd.f32 %v697, %v739
      %v756 = vadd.f32 %v698, %v711
      %v757 = vadd.f32 %v699, %v715
      %v758 = vadd.f32 %v700, %v719
      %v759 = vadd.f32 %v701, %v723
      %v760 = vadd.f32 %v702, %v727
      %v761 = vadd.f32 %v703, %v731
      %v762 = vadd.f32 %v704, %v735
      %v763 = vadd.f32 %v705, %v739
      %764 = vst [vmem:[#allocation9] sm:$0xff] %v748
      %765 = vst [vmem:[#allocation9 + $0x8] sm:$0xff] %v749
      %766 = vst [vmem:[#allocation9 + $0x10] sm:$0xff] %v750
      %767 = vst [vmem:[#allocation9 + $0x18] sm:$0xff] %v751
      %768 = vst [vmem:[#allocation9 + $0x20] sm:$0xff] %v752
      %769 = vst [vmem:[#allocation9 + $0x28] sm:$0xff] %v753
      %770 = vst [vmem:[#allocation9 + $0x30] sm:$0xff] %v754
      %771 = vst [vmem:[#allocation9 + $0x38] sm:$0xff] %v755
      %772 = vst [vmem:[#allocation9 + $0x40] sm:$0xff] %v756
      %773 = vst [vmem:[#allocation9 + $0x48] sm:$0xff] %v757
      %774 = vst [vmem:[#allocation9 + $0x50] sm:$0xff] %v758
      %775 = vst [vmem:[#allocation9 + $0x58] sm:$0xff] %v759
      %776 = vst [vmem:[#allocation9 + $0x60] sm:$0xff] %v760
      %777 = vst [vmem:[#allocation9 + $0x68] sm:$0xff] %v761
      %778 = vst [vmem:[#allocation9 + $0x70] sm:$0xff] %v762
      %779 = vst [vmem:[#allocation9 + $0x78] sm:$0xff] %v763
    $region33: #{tpu_custom_call.1} parent=1 // pred_fallthru
      _
    // Predicated region
    $region34: #{tpu_custom_call.1} parent=1 // pred_check
      _
    $region35: #{tpu_custom_call.1} parent=1 // pred_check_branch
      %781 = sbr.rel (0) target = $region37
    $region36: #{tpu_custom_call.1} parent=1 // pred_region
      %s783 = ssub.s32 2048, 2048
      %784 = vsyncadd [#allocation5], %s783
      %s785 = sshll.u32 [#allocation9], 4
      %s786 = int_to_ptr.vmem [resolvable:$true] %s785
      %791 = dma.vmem_to_hbm [thread:$0]  %s786, 2048, %s3, [#allocation5], 1024, 1024, 64
    $region37: #{tpu_custom_call.1} parent=1 // pred_fallthru
      _
    // Predicated region
    $region38: #{tpu_custom_call.1} parent=1 // pred_check
      _
    $region39: #{tpu_custom_call.1} parent=1 // pred_check_branch
      %793 = sbr.rel (0) target = $region41
    $region40: #{tpu_custom_call.1} parent=1 // pred_region
      %794 = dma.done [#allocation5], 2048
    $region41: #{tpu_custom_call.1} parent=1 // pred_fallthru
      _
    %795 = vsyncpa [#allocation4], 1
    %796 = vsyncpa [#allocation7], 1
    %797 = vsyncpa [#allocation5], 1

</llo_original>
